<compile_context>
chip_gen: v5e
topology: v5e:2x2
jax: 0.10.0
libtpu: 0.0.40
codegen_flags: <defaults>
</compile_context>

<pallas_src>
import jax
import jax.numpy as jnp
from jax.experimental import pallas as pl
from jax.experimental.pallas import tpu as pltpu

# ---- RobustLosses.__init__ defaults (no learned parameters in this module) ----
CE_WEIGHT = 0.01
ALPHA = 1.0      # kernels specialize the alpha == 1 Barron term
C = 0.001
INV_TEMP = 10.0  # hard-coded in corr_volume_loss

LANE = 128


# ---------------------------------------------------------------------------
# Tile-size helpers (byte-budget driven, per review).
# ---------------------------------------------------------------------------
def _pick_corr_row_tile(hw, block_bytes):
    """Row tile for the (tile_r, hw) corr block: biggest multiple of 8 dividing hw
    under the byte budget; collapses to hw (grid (B,)) when the full slab fits."""
    cap = max(8, int(block_bytes) // (hw * 4))
    if cap >= hw:
        return hw
    t = cap - cap % 8
    while t >= 8:
        if hw % t == 0:
            return t
        t -= 8
    # No multiple-of-8 divisor under the budget: full-row block if it is still
    # safely below the scoped-VMEM ceiling, otherwise fail loudly (review guard).
    if hw * hw * 4 <= 12 * 2 ** 20:
        return hw
    raise ValueError(
        f"corr_volume_loss_pallas: hw={hw} has no multiple-of-8 row tile within "
        f"the {block_bytes}-byte budget and a full-row block would blow VMEM.")


def _pick_reg_tile(nrow, bytes_per_row, budget_bytes):
    """Pixel-row tile (rows of 128 lanes) for the regression kernel."""
    cap = max(8, int(budget_bytes) // (2 * max(1, bytes_per_row)))  # 2 = dbl buffer
    if cap >= nrow:
        return nrow
    t = max(8, cap - cap % 8)
    d = t
    while d >= 8:                       # prefer a divisor: no ragged tail at all
        if nrow % d == 0:
            return d
        d -= 8
    return t                            # ragged tail handled by in-kernel mask


# ---------------------------------------------------------------------------
# Kernel 1: corr_volume_loss hot path.
#   For cv10 = inv_temp * corr_volume (B, HW, HW):
#     nll[b,i,j] = -log_softmax(cv10, dim=1)[b,i,j] - log_softmax(cv10, dim=2)[b,i,j]
#                = lse_col[b,j] + lse_row[b,i] - 2*cv10[b,i,j]
#   The kernel only produces lse_row (B, HW, 1) and lse_col (B, 1, HW); the
#   K-element mnn gather + combine happens in JAX (tiny).
# ---------------------------------------------------------------------------
def _corr_lse_kernel(cv_ref, lse_row_ref, lse_col_ref, m_acc, l_col):
    ri = pl.program_id(1)

    @pl.when(ri == 0)
    def _():
        m_acc[...] = jnp.full_like(m_acc, -jnp.inf)
        l_col[...] = jnp.zeros_like(l_col)

    cv = cv_ref[0].astype(jnp.float32) * INV_TEMP            # (tile_r, hw)
    tile_r = cv.shape[0]

    # Single-exp pass: cv10 = 10 * cosine-similarity is bounded (~[-10, 10]), so a
    # per-tile scalar-max shift keeps exp() far from f32 under/overflow while the
    # online (m, l) pair handles cross-tile rescaling.
    m_r = jnp.max(cv, axis=1, keepdims=True)                 # (tile_r, 1) lane reduce
    g = jnp.max(m_r, axis=0, keepdims=True)                  # (1, 1) scalar max
    e = jnp.exp(cv - g)                                      # single EUP pass

    # Row LSE (lane-axis reduce on the XLU).
    lse_row_ref[0] = g + jnp.log(jnp.sum(e, axis=1, keepdims=True))
    # TODO(synk): the (tile_r, 1) lse_row store is lane-width-1 (masked vst); the
    # total volume is only hw floats per batch so a lane-dense layout is not worth
    # the extra in-kernel transpose here.

    # Column partial sums on the (otherwise idle) MXU instead of a sublane reduce.
    ones_row = jnp.ones((1, tile_r), jnp.float32)
    col_part = jnp.dot(ones_row, e, preferred_element_type=jnp.float32)  # (1, hw)

    # Online column LSE across the "arbitrary" row-tile axis.
    m_prev = m_acc[...]
    m_new = jnp.maximum(m_prev, g)
    l_col[...] = (l_col[...] * jnp.exp(m_prev - m_new)
                  + col_part * jnp.exp(g - m_new))
    m_acc[...] = m_new

    # Finalize once, on the last row tile of each batch (resident output block).
    @pl.when(ri == pl.num_programs(1) - 1)
    def _():
        lse_col_ref[0] = m_acc[...] + jnp.log(l_col[...])


def corr_volume_loss_pallas(mnn, corr_volume, scale, *, block_bytes=6 * 2 ** 20):
    """mnn: (K,3) int indices (b, i, j); corr_volume: (B,H,W,H,W) (any float dtype)."""
    b, h, w = corr_volume.shape[:3]
    hw = h * w
    cv = corr_volume.reshape(b, hw, hw)        # metadata-only reshape; cast in-kernel
    tile_r = _pick_corr_row_tile(hw, block_bytes)
    num_row_tiles = hw // tile_r
    blk_bytes = tile_r * hw * 4
    vmem_limit = int(max(16 * 2 ** 20, 2 * blk_bytes + 16 * hw * 4 + (2 << 20)))

    lse_row, lse_col = pl.pallas_call(
        _corr_lse_kernel,
        out_shape=(jax.ShapeDtypeStruct((b, hw, 1), jnp.float32),
                   jax.ShapeDtypeStruct((b, 1, hw), jnp.float32)),
        grid=(b, num_row_tiles),
        in_specs=[pl.BlockSpec((1, tile_r, hw), lambda bi, ri: (bi, ri, 0))],
        out_specs=(pl.BlockSpec((1, tile_r, 1), lambda bi, ri: (bi, ri, 0)),
                   pl.BlockSpec((1, 1, hw), lambda bi, ri: (bi, 0, 0))),
        scratch_shapes=[pltpu.VMEM((1, 1), jnp.float32),      # running scalar max
                        pltpu.VMEM((1, hw), jnp.float32)],    # running column sums
        compiler_params=pltpu.CompilerParams(
            dimension_semantics=("parallel", "arbitrary"),
            vmem_limit_bytes=vmem_limit),
    )(cv)

    bi, ii, jj = mnn[:, 0], mnn[:, 1], mnn[:, 2]
    cv_sel = cv[bi, ii, jj].astype(jnp.float32)               # K values only
    nll_sel = lse_row[bi, ii, 0] + lse_col[bi, 0, jj] - 2.0 * INV_TEMP * cv_sel
    # TODO(synk): per-scale wandb.log of this loss is logging-only and omitted.
    return jnp.mean(nll_sel)


# ---------------------------------------------------------------------------
# Kernel 2: regression_loss hot path (gm + delta fused per scale).
#   For each (flow, certainty) pair sharing the same gt_warp/prob:
#     ce  = mean over all pixels of BCE_with_logits(certainty[:,0], prob)
#     reg = mean over {prob > 0.99} of sqrt(dx^2 + dy^2 + cs^2)   (alpha=1 form)
#           (0 if the selection is empty, matching the torch.any() fallback)
#   The kernel emits raw per-batch sums (ce_sum_p, reg_sum_p, cnt) folded into an
#   (n_acc, acc_rows, 128) resident output block; divides happen in JAX.
# ---------------------------------------------------------------------------
def _make_fused_regression_kernel(num_pairs, cs2, nrow, tile_rows, acc_rows, ragged):
    fold_factor = tile_rows // acc_rows

    def _fold(x):                                  # (tile_rows,128) -> (acc_rows,128)
        if fold_factor == 1:
            return x
        return jnp.sum(x.reshape(fold_factor, acc_rows, LANE), axis=0)

    def kernel(*refs):
        x2_ref = refs[0]
        prob_ref = refs[1]
        pair_refs = refs[2:2 + 2 * num_pairs]
        out_ref = refs[2 + 2 * num_pairs]

        step = pl.program_id(1)

        @pl.when(step == 0)
        def _():
            out_ref[...] = jnp.zeros_like(out_ref)

        x2x = x2_ref[0, 0].astype(jnp.float32)
        x2y = x2_ref[0, 1].astype(jnp.float32)
        prob = prob_ref[0].astype(jnp.float32)

        if ragged:
            # Mask only matters on the last (padded) tile; elsewhere it is all-true.
            rows_left = nrow - step * tile_rows
            row_ids = jax.lax.broadcasted_iota(jnp.int32, (tile_rows, LANE), 0)
            rvalid = row_ids < rows_left
        else:
            rvalid = None

        sel = prob > 0.99
        if rvalid is not None:
            sel = jnp.logical_and(sel, rvalid)
        out_ref[0, 2 * num_pairs] += _fold(jnp.where(sel, 1.0, 0.0))     # match count

        for p in range(num_pairs):
            flow_ref = pair_refs[2 * p]
            cert_ref = pair_refs[2 * p + 1]
            fx = flow_ref[0, 0].astype(jnp.float32)
            fy = flow_ref[0, 1].astype(jnp.float32)
            logits = cert_ref[0].astype(jnp.float32)

            # numerically-stable BCE-with-logits; gt_cert = prob (epe_mask_prob_th=None)
            bce = (jnp.maximum(logits, 0.0) - logits * prob
                   + jnp.log1p(jnp.exp(-jnp.abs(logits))))
            if rvalid is not None:
                bce = jnp.where(rvalid, bce, 0.0)

            # Barron term with alpha=1: cs*sqrt((epe/cs)^2+1) == sqrt(dx^2+dy^2+cs^2)
            dx = fx - x2x
            dy = fy - x2y
            reg = jnp.where(sel, jnp.sqrt(dx * dx + dy * dy + cs2), 0.0)

            out_ref[0, 2 * p] += _fold(bce)
            out_ref[0, 2 * p + 1] += _fold(reg)

    return kernel


def _regression_pair_ref(x2, prob, flow, certainty, scale):
    """Pure-JAX fallback for a single (flow, certainty) pair (odd H*W only)."""
    f = jnp.transpose(flow, (0, 2, 3, 1)).astype(jnp.float32)
    epe = jnp.linalg.norm(f - x2.astype(jnp.float32), axis=-1)
    logits = certainty[:, 0].astype(jnp.float32)
    gt = prob.astype(jnp.float32)
    bce = (jnp.maximum(logits, 0.0) - logits * gt
           + jnp.log1p(jnp.exp(-jnp.abs(logits))))
    ce = jnp.mean(bce)
    cs = C * float(scale)
    mask = gt > 0.99
    reg_el = jnp.sqrt(epe * epe + cs * cs)
    cnt = jnp.sum(mask.astype(jnp.float32))
    reg = jnp.where(cnt > 0.0,
                    jnp.sum(jnp.where(mask, reg_el, 0.0)) / jnp.maximum(cnt, 1.0),
                    0.0)
    return ce, reg


def fused_regression_loss_pallas(x2, prob, flow_cert_pairs, scale, *,
                                 tile_rows=None, budget_bytes=8 * 2 ** 20):
    """x2: (B,H,W,2), prob: (B,H,W), flow_cert_pairs: list of ((B,2,H,W),(B,1,H,W)).

    Returns a list of (ce, reg) scalar pairs, one per (flow, certainty) pair."""
    b, _, h, w = flow_cert_pairs[0][0].shape
    npix = h * w
    num_pairs = len(flow_cert_pairs)
    cs = C * float(scale)
    cs2 = cs * cs

    if npix % LANE != 0:
        # TODO(synk): odd H*W (not a multiple of 128) falls back to plain JAX; a
        # Pallas path would need HBM padding or a non-flattened (H, W) tiling.
        return [_regression_pair_ref(x2, prob, fl, ct, scale)
                for fl, ct in flow_cert_pairs]

    nrow = npix // LANE
    bytes_per_row = (3 + 3 * num_pairs) * LANE * 4           # f32 upper bound
    if tile_rows is None:
        tile_rows = _pick_reg_tile(nrow, bytes_per_row, budget_bytes)
    tile_rows = int(max(1, min(int(tile_rows), nrow)))
    if tile_rows < nrow and tile_rows % 8 != 0:              # keep second-minor legal
        tile_rows = min(nrow, max(8, tile_rows - tile_rows % 8))
    num_tiles = pl.cdiv(nrow, tile_rows)
    ragged = (nrow % tile_rows) != 0
    acc_rows = 8 if tile_rows % 8 == 0 else tile_rows
    n_acc = 2 * num_pairs + 1

    # Lane-dense, copy-free views of the planar NCHW tensors (dtype is preserved,
    # casts happen in-kernel).  The only wrapper-side copy left is the single
    # channel-last -> channel-first transpose of gt_warp.
    # TODO(synk): that transpose could be removed if the caller provides gt_warp
    # channel-first; kept here to preserve the module's (B,H,W,2) interface.
    x2p = jnp.transpose(x2, (0, 3, 1, 2)).reshape(b, 2, nrow, LANE)
    inputs = [x2p, prob.reshape(b, nrow, LANE)]
    in_specs = [
        pl.BlockSpec((1, 2, tile_rows, LANE), lambda bi, pi: (bi, 0, pi, 0)),
        pl.BlockSpec((1, tile_rows, LANE), lambda bi, pi: (bi, pi, 0)),
    ]
    for fl, ct in flow_cert_pairs:
        inputs.append(fl.reshape(b, 2, nrow, LANE))
        in_specs.append(pl.BlockSpec((1, 2, tile_rows, LANE),
                                     lambda bi, pi: (bi, 0, pi, 0)))
        inputs.append(ct.reshape(b, nrow, LANE))
        in_specs.append(pl.BlockSpec((1, tile_rows, LANE),
                                     lambda bi, pi: (bi, pi, 0)))

    kernel = _make_fused_regression_kernel(num_pairs, cs2, nrow, tile_rows,
                                           acc_rows, ragged)
    in_block_bytes = bytes_per_row * tile_rows
    out_block_bytes = n_acc * acc_rows * LANE * 4
    vmem_limit = int(max(16 * 2 ** 20,
                         2 * in_block_bytes + 2 * out_block_bytes + (2 << 20)))

    out = pl.pallas_call(
        kernel,
        out_shape=jax.ShapeDtypeStruct((b, n_acc, acc_rows, LANE), jnp.float32),
        grid=(b, num_tiles),
        in_specs=in_specs,
        out_specs=pl.BlockSpec((1, n_acc, acc_rows, LANE),
                               lambda bi, pi: (bi, 0, 0, 0)),
        compiler_params=pltpu.CompilerParams(
            dimension_semantics=("parallel", "arbitrary"),
            vmem_limit_bytes=vmem_limit),
    )(*inputs)

    # Tiny final reductions / divides in JAX (per-batch partials combined here).
    sums = jnp.sum(out, axis=(0, 2, 3))                      # (n_acc,)
    n_total = float(b * npix)
    cnt = sums[2 * num_pairs]
    results = []
    for p in range(num_pairs):
        ce = sums[2 * p] / n_total
        reg = jnp.where(cnt > 0.0, sums[2 * p + 1] / jnp.maximum(cnt, 1.0), 0.0)
        results.append((ce, reg))
    # TODO(synk): pck_05 / wandb.log side-effects at scale == 1 are logging-only.
    return results


# ---------------------------------------------------------------------------
# RobustLosses.forward
#   corresps: {scale: {'certainty', 'flow', optional 'corr_volume' /
#                      'gm_flow' + 'gm_certainty'}}
#   gt_data:  {scale: {'gt_warp', 'gt_prob', optional 'mnn'}}
# ---------------------------------------------------------------------------
def robust_losses_forward(corresps, gt_data, *, reg_tile_rows=None,
                          reg_budget_bytes=8 * 2 ** 20,
                          corr_block_bytes=6 * 2 ** 20):
    # TODO(synk): get_gt_warp (depth-projected GT warp) and the torch.cdist/nonzero
    # mutual-NN search have data-dependent shapes and external geometry deps; their
    # outputs (gt_warp, gt_prob, mnn) are taken as precomputed inputs.
    tot_loss = jnp.float32(0.0)
    for scale, sc in corresps.items():
        x2 = gt_data[scale]['gt_warp']
        prob = gt_data[scale]['gt_prob']

        pairs = []
        if sc.get('corr_volume') is not None:
            tot_loss = tot_loss + corr_volume_loss_pallas(
                gt_data[scale]['mnn'], sc['corr_volume'], scale,
                block_bytes=corr_block_bytes)
        elif sc.get('gm_flow') is not None:
            pairs.append((sc['gm_flow'], sc['gm_certainty']))
        pairs.append((sc['flow'], sc['certainty']))

        stats = fused_regression_loss_pallas(
            x2, prob, pairs, scale,
            tile_rows=reg_tile_rows, budget_bytes=reg_budget_bytes)
        for ce, reg in stats:
            tot_loss = tot_loss + CE_WEIGHT * ce + reg
    return tot_loss


# ---------------------------------------------------------------------------
# Pure-JAX reference (mirrors the PyTorch module with its default hparams).
# ---------------------------------------------------------------------------
def _reference_forward(corresps, gt_data):
    def reg_ref(x2, prob, flow, certainty, scale):
        f = jnp.transpose(flow, (0, 2, 3, 1)).astype(jnp.float32)
        epe = jnp.linalg.norm(f - x2.astype(jnp.float32), axis=-1)
        logits = certainty[:, 0].astype(jnp.float32)
        gt = prob.astype(jnp.float32)
        bce = (jnp.maximum(logits, 0.0) - logits * gt
               + jnp.log1p(jnp.exp(-jnp.abs(logits))))
        ce = jnp.mean(bce)
        cs = C * scale
        mask = gt > 0.99
        reg_el = cs ** ALPHA * ((epe / cs) ** 2 + 1.0) ** (ALPHA / 2.0)
        cnt = jnp.sum(mask.astype(jnp.float32))
        reg = jnp.where(cnt > 0.0,
                        jnp.sum(jnp.where(mask, reg_el, 0.0)) / jnp.maximum(cnt, 1.0),
                        0.0)
        return ce, reg

    def corr_ref(mnn, cv, scale):
        b, h, w = cv.shape[:3]
        hw = h * w
        cvf = cv.reshape(b, hw, hw).astype(jnp.float32) * INV_TEMP
        nll = -(jax.nn.log_softmax(cvf, axis=1) + jax.nn.log_softmax(cvf, axis=2))
        return jnp.mean(nll[mnn[:, 0], mnn[:, 1], mnn[:, 2]])

    tot = jnp.float32(0.0)
    for scale, sc in corresps.items():
        x2 = gt_data[scale]['gt_warp']
        prob = gt_data[scale]['gt_prob']
        if sc.get('corr_volume') is not None:
            tot = tot + corr_ref(gt_data[scale]['mnn'], sc['corr_volume'], scale)
        elif sc.get('gm_flow') is not None:
            ce, rg = reg_ref(x2, prob, sc['gm_flow'], sc['gm_certainty'], scale)
            tot = tot + CE_WEIGHT * ce + rg
        ce, rg = reg_ref(x2, prob, sc['flow'], sc['certainty'], scale)
        tot = tot + CE_WEIGHT * ce + rg
    return tot


if __name__ == "__main__":
    key = jax.random.PRNGKey(0)
    ks = jax.random.split(key, 16)
    b = 2

    # scale 8 (coarse): corr_volume branch + delta regression (H*W = 256).
    h8 = w8 = 16
    hw8 = h8 * w8
    corr_volume = 0.1 * jax.random.normal(ks[0], (b, h8, w8, h8, w8), jnp.float32)
    cert8 = jax.random.normal(ks[1], (b, 1, h8, w8), jnp.float32)
    flow8 = 0.5 * jax.random.normal(ks[2], (b, 2, h8, w8), jnp.float32)
    gt_warp8 = jax.random.uniform(ks[3], (b, h8, w8, 2), jnp.float32, -1.0, 1.0)
    gt_prob8 = (jax.random.uniform(ks[4], (b, h8, w8)) > 0.3).astype(jnp.float32)
    K = 32
    mnn8 = jnp.stack([
        jax.random.randint(ks[5], (K,), 0, b),
        jax.random.randint(ks[6], (K,), 0, hw8),
        jax.random.randint(ks[7], (K,), 0, hw8),
    ], axis=1)

    # scale 1 (fine): gm_flow branch + delta regression fused in one kernel call
    # (H*W = 2304 -> 18 lane-rows: exercises multi-tile, fold and ragged-tail paths).
    h1 = w1 = 48
    cert1 = jax.random.normal(ks[8], (b, 1, h1, w1), jnp.float32)
    flow1 = 0.5 * jax.random.normal(ks[9], (b, 2, h1, w1), jnp.float32)
    gm_flow1 = 0.5 * jax.random.normal(ks[10], (b, 2, h1, w1), jnp.float32)
    gm_cert1 = jax.random.normal(ks[11], (b, 1, h1, w1), jnp.float32)
    gt_warp1 = jax.random.uniform(ks[12], (b, h1, w1, 2), jnp.float32, -1.0, 1.0)
    gt_prob1 = (jax.random.uniform(ks[13], (b, h1, w1)) > 0.3).astype(jnp.float32)

    corresps = {
        8: {'certainty': cert8, 'flow': flow8, 'corr_volume': corr_volume},
        1: {'certainty': cert1, 'flow': flow1,
            'gm_flow': gm_flow1, 'gm_certainty': gm_cert1},
    }
    gt_data = {
        8: {'gt_warp': gt_warp8, 'gt_prob': gt_prob8, 'mnn': mnn8},
        1: {'gt_warp': gt_warp1, 'gt_prob': gt_prob1},
    }

    # Small tile overrides so the multi-tile accumulation / ragged-tail / online-LSE
    # paths are exercised at these test shapes (production defaults pick big tiles).
    tot_loss = robust_losses_forward(corresps, gt_data,
                                     reg_tile_rows=16,
                                     corr_block_bytes=128 * hw8 * 4)
    tot_loss = jax.block_until_ready(tot_loss)

    ref_loss = jax.block_until_ready(_reference_forward(corresps, gt_data))
    assert jnp.isfinite(tot_loss), "total loss is not finite"
    assert jnp.allclose(tot_loss, ref_loss, rtol=1e-3, atol=1e-3), (tot_loss, ref_loss)
    print("KERNEL_OK")
</pallas_src>

<mosaic_0001>
module attributes {stable_mosaic.version = 11 : i64} {
  func.func @_corr_lse_kernel(%arg0: i32, %arg1: i32, %arg2: memref<1x128x256xf32, #tpu.memory_space<vmem>>, %arg3: memref<1x128x1xf32, #tpu.memory_space<vmem>>, %arg4: memref<1x1x256xf32, #tpu.memory_space<vmem>>, %arg5: memref<1x1xf32, #tpu.memory_space<vmem>>, %arg6: memref<1x256xf32, #tpu.memory_space<vmem>>) attributes {dimension_semantics = [#tpu.dimension_semantics<parallel>, #tpu.dimension_semantics<arbitrary>], iteration_bounds = array<i64: 2, 2>, scalar_prefetch = 0 : i64, scratch_operands = 2 : i64, tpu.core_type = #tpu.core_type<tc>, window_params = [{transform_indices = @transform_0, window_bounds = array<i64: 1, 128, 256>}, {transform_indices = @transform_1, window_bounds = array<i64: 1, 128, 1>}, {transform_indices = @transform_2, window_bounds = array<i64: 1, 1, 256>}]} {
    %c0_i32 = arith.constant 0 : i32
    %0 = arith.cmpi eq, %arg1, %c0_i32 : i32
    %1 = arith.extui %0 : i1 to i32
    %c0_i32_0 = arith.constant 0 : i32
    %2 = arith.cmpi ne, %1, %c0_i32_0 : i32
    scf.if %2 {
      %cst_20 = arith.constant 0xFF800000 : f32
      %41 = vector.broadcast %cst_20 : f32 to vector<1x1xf32>
      %c0_21 = arith.constant 0 : index
      %c0_22 = arith.constant 0 : index
      %42 = vector.load %arg5[%c0_21, %c0_22] : memref<1x1xf32, #tpu.memory_space<vmem>>, vector<1x1xf32>
      tpu.vector_store %arg5[%c0_21, %c0_22], %41 {strides = array<i32>} : memref<1x1xf32, #tpu.memory_space<vmem>>, vector<1x1xf32>,
      %cst_23 = arith.constant 0.000000e+00 : f32
      %43 = vector.broadcast %cst_23 : f32 to vector<1x256xf32>
      %c0_24 = arith.constant 0 : index
      %c0_25 = arith.constant 0 : index
      %44 = vector.load %arg6[%c0_24, %c0_25] : memref<1x256xf32, #tpu.memory_space<vmem>>, vector<1x256xf32>
      tpu.vector_store %arg6[%c0_24, %c0_25], %43 {strides = array<i32>} : memref<1x256xf32, #tpu.memory_space<vmem>>, vector<1x256xf32>,
    } else {
    }
    %c0 = arith.constant 0 : index
    %c0_1 = arith.constant 0 : index
    %c0_2 = arith.constant 0 : index
    %3 = vector.load %arg2[%c0, %c0_1, %c0_2] : memref<1x128x256xf32, #tpu.memory_space<vmem>>, vector<1x128x256xf32>
    %4 = vector.shape_cast %3 : vector<1x128x256xf32> to vector<128x256xf32>
    %cst = arith.constant 1.000000e+01 : f32
    %5 = vector.broadcast %cst : f32 to vector<128x256xf32>
    %6 = arith.mulf %4, %5 : vector<128x256xf32>
    %cst_3 = arith.constant dense<0xFF800000> : vector<128xf32>
    %7 = vector.multi_reduction <maximumf>, %6, %cst_3 [1] : vector<128x256xf32> to vector<128xf32>
    %8 = vector.shape_cast %7 : vector<128xf32> to vector<128x1xf32>
    %cst_4 = arith.constant dense<0xFF800000> : vector<1xf32>
    %9 = vector.multi_reduction <maximumf>, %8, %cst_4 [0] : vector<128x1xf32> to vector<1xf32>
    %10 = vector.shape_cast %9 : vector<1xf32> to vector<1x1xf32>
    %11 = vector.broadcast %10 : vector<1x1xf32> to vector<128x256xf32>
    %12 = arith.subf %6, %11 : vector<128x256xf32>
    %13 = math.exp %12 : vector<128x256xf32>
    %cst_5 = arith.constant dense<0.000000e+00> : vector<128xf32>
    %14 = vector.multi_reduction <add>, %13, %cst_5 [1] : vector<128x256xf32> to vector<128xf32>
    %15 = vector.shape_cast %14 : vector<128xf32> to vector<128x1xf32>
    %16 = math.log %15 : vector<128x1xf32>
    %17 = vector.broadcast %10 : vector<1x1xf32> to vector<128x1xf32>
    %18 = arith.addf %17, %16 : vector<128x1xf32>
    %c0_6 = arith.constant 0 : index
    %c0_7 = arith.constant 0 : index
    %c0_8 = arith.constant 0 : index
    %19 = vector.load %arg3[%c0_6, %c0_7, %c0_8] : memref<1x128x1xf32, #tpu.memory_space<vmem>>, vector<1x128x1xf32>
    %20 = vector.shape_cast %19 : vector<1x128x1xf32> to vector<128x1xf32>
    %21 = vector.shape_cast %18 : vector<128x1xf32> to vector<1x128x1xf32>
    tpu.vector_store %arg3[%c0_6, %c0_7, %c0_8], %21 {strides = array<i32>} : memref<1x128x1xf32, #tpu.memory_space<vmem>>, vector<1x128x1xf32>,
    %cst_9 = arith.constant 1.000000e+00 : f32
    %22 = vector.broadcast %cst_9 : f32 to vector<1x128xf32>
    %cst_10 = arith.constant dense<0.000000e+00> : vector<1x256xf32>
    %23 = tpu.matmul %22, %13, %cst_10 {dimension_numbers = #tpu.dot_dimension_numbers<[1], [0], [0], [1], [0, 0, 1, 1], [], []>} : vector<1x128xf32>, vector<128x256xf32>, vector<1x256xf32> -> vector<1x256xf32>
    %c0_11 = arith.constant 0 : index
    %c0_12 = arith.constant 0 : index
    %24 = vector.load %arg5[%c0_11, %c0_12] : memref<1x1xf32, #tpu.memory_space<vmem>>, vector<1x1xf32>
    %25 = arith.maximumf %24, %10 : vector<1x1xf32>
    %c0_13 = arith.constant 0 : index
    %c0_14 = arith.constant 0 : index
    %26 = vector.load %arg6[%c0_13, %c0_14] : memref<1x256xf32, #tpu.memory_space<vmem>>, vector<1x256xf32>
    %27 = arith.subf %24, %25 : vector<1x1xf32>
    %28 = math.exp %27 : vector<1x1xf32>
    %29 = vector.broadcast %28 : vector<1x1xf32> to vector<1x256xf32>
    %30 = arith.mulf %26, %29 : vector<1x256xf32>
    %31 = arith.subf %10, %25 : vector<1x1xf32>
    %32 = math.exp %31 : vector<1x1xf32>
    %33 = vector.broadcast %32 : vector<1x1xf32> to vector<1x256xf32>
    %34 = arith.mulf %23, %33 : vector<1x256xf32>
    %35 = arith.addf %30, %34 : vector<1x256xf32>
    %c0_15 = arith.constant 0 : index
    %c0_16 = arith.constant 0 : index
    %36 = vector.load %arg6[%c0_15, %c0_16] : memref<1x256xf32, #tpu.memory_space<vmem>>, vector<1x256xf32>
    tpu.vector_store %arg6[%c0_15, %c0_16], %35 {strides = array<i32>} : memref<1x256xf32, #tpu.memory_space<vmem>>, vector<1x256xf32>,
    %c0_17 = arith.constant 0 : index
    %c0_18 = arith.constant 0 : index
    %37 = vector.load %arg5[%c0_17, %c0_18] : memref<1x1xf32, #tpu.memory_space<vmem>>, vector<1x1xf32>
    tpu.vector_store %arg5[%c0_17, %c0_18], %25 {strides = array<i32>} : memref<1x1xf32, #tpu.memory_space<vmem>>, vector<1x1xf32>,
    %c1_i32 = arith.constant 1 : i32
    %38 = arith.cmpi eq, %arg1, %c1_i32 : i32
    %39 = arith.extui %38 : i1 to i32
    %c0_i32_19 = arith.constant 0 : i32
    %40 = arith.cmpi ne, %39, %c0_i32_19 : i32
    scf.if %40 {
      %c0_20 = arith.constant 0 : index
      %c0_21 = arith.constant 0 : index
      %41 = vector.load %arg5[%c0_20, %c0_21] : memref<1x1xf32, #tpu.memory_space<vmem>>, vector<1x1xf32>
      %c0_22 = arith.constant 0 : index
      %c0_23 = arith.constant 0 : index
      %42 = vector.load %arg6[%c0_22, %c0_23] : memref<1x256xf32, #tpu.memory_space<vmem>>, vector<1x256xf32>
      %43 = math.log %42 : vector<1x256xf32>
      %44 = vector.broadcast %41 : vector<1x1xf32> to vector<1x256xf32>
      %45 = arith.addf %44, %43 : vector<1x256xf32>
      %c0_24 = arith.constant 0 : index
      %c0_25 = arith.constant 0 : index
      %c0_26 = arith.constant 0 : index
      %46 = vector.load %arg4[%c0_24, %c0_25, %c0_26] : memref<1x1x256xf32, #tpu.memory_space<vmem>>, vector<1x1x256xf32>
      %47 = vector.shape_cast %46 : vector<1x1x256xf32> to vector<1x256xf32>
      %48 = vector.shape_cast %45 : vector<1x256xf32> to vector<1x1x256xf32>
      tpu.vector_store %arg4[%c0_24, %c0_25, %c0_26], %48 {strides = array<i32>} : memref<1x1x256xf32, #tpu.memory_space<vmem>>, vector<1x1x256xf32>,
    } else {
    }
    return
  }
  func.func @transform_0(%arg0: i32, %arg1: i32) -> (i32, i32, i32) {
    %c0_i32 = arith.constant 0 : i32
    %c0_i32_0 = arith.constant 0 : i32
    return %arg0, %arg1, %c0_i32 : i32, i32, i32
  }
  func.func @transform_1(%arg0: i32, %arg1: i32) -> (i32, i32, i32) {
    %c0_i32 = arith.constant 0 : i32
    %c0_i32_0 = arith.constant 0 : i32
    return %arg0, %arg1, %c0_i32 : i32, i32, i32
  }
  func.func @transform_2(%arg0: i32, %arg1: i32) -> (i32, i32, i32) {
    %c0_i32 = arith.constant 0 : i32
    %c0_i32_0 = arith.constant 0 : i32
    %c0_i32_1 = arith.constant 0 : i32
    return %arg0, %c0_i32, %c0_i32_0 : i32, i32, i32
  }
}

</mosaic_0001>

<llo_original>
// kernel: tpu_custom_call.1
$region0: #{tpu_custom_call.1}
  #allocation0 [shape = 'u32[]', space=smem, size = 0x4, offset = 0x4, fixed_abs, tag = 'smem constant byte address 0x4 - core index']
  #allocation1 [shape = 'u32[72,128]{1,0:T(1,128)}', space=vmem, size = 0x9000, scoped, tag = 'internal scratch']
  #allocation2 [shape = 'f32[1,1]{1,0:T(1,128)}', space=vmem, size = 0x200, scoped, tag = 'scratch operand']
  #allocation3 [shape = 'f32[1,256]{1,0:T(1,128)}', space=vmem, size = 0x400, scoped, tag = 'scratch operand']
  %s0 = inlined_call_operand.hbm [shape: f32[2,256,256], index: 0, kind: input, shape index: {}]
  %s1 = inlined_call_operand.vmem [shape: f32[2,256,1], index: 1, kind: output, shape index: {0}]
  %s2 = inlined_call_operand.hbm [shape: f32[2,1,256], index: 2, kind: output, shape index: {1}]
  %3 = xla_tuple %s1, %s2
  %s4 = sld [smem:[#allocation0]]
  $region57: #{tpu_custom_call.1} parent=0
    _
  %s6 = ssub.s32 1, %s4
  %s7 = scalar_select 0, %s6, %s4
  $region1: #{tpu_custom_call.1} parent=0
    #allocation4 [shape = 'u8[262144]{0}', space=vmem, size = 0x40000, scoped, tag = 'input window, operand 0']
    #allocation5 [shape = 's32[2]{0}', space=sflag, size = 0x8, scoped, tag = 'scoped memory for tpu_custom_call.1']
    #allocation6 [shape = 's32[2]{0}', space=sflag, size = 0x8, scoped, tag = 'scoped memory for tpu_custom_call.1']
    #allocation7 [shape = 'u8[2048]{0}', space=vmem, size = 0x800, scoped, tag = 'output window, operand 1']
    %8 = vsyncpa [#allocation5], 0
    %s9 = scalar_lea.sflag [#allocation5], 1
    %10 = vsyncpa %s9, 0
    %11 = vsyncpa [#allocation6], 0
    %s12 = scalar_lea.sflag [#allocation6], 1
    %13 = vsyncpa %s12, 0
    loop: start=0, step=1, limit=6
    $region2: #{tpu_custom_call.1} parent=1 // loop_pre_header
      _
    $region3: #{tpu_custom_call.1} parent=1 // loop_header
      %s15 = sphi 0, %s19
      %p16 = scmp.ge.s32.totalorder %s15, 6
      %s22 = sphi 0, %s34
      %s23 = sphi 0, %s30
      %s24 = sphi 0, %s22
      %s25 = sphi 0, %s23
      %s26 = sphi 0, %s24
      %s27 = sphi 0, %s25
      %s39 = sphi 0, %s41
      %s42 = sphi 0, %s39
      %s43 = sphi 0, %s42
      %s59 = sphi 0, %s43
      %s67 = sphi 0, %s69
      %s70 = sphi 0, %s67
      %s71 = sphi 0, %s70
      %s87 = sphi 0, %s71
      %s93 = sphi 0, %s95
      %s96 = sphi 0, %s93
      %s97 = sphi 0, %s96
      %s113 = sphi 0, %s97
    $region4: #{tpu_custom_call.1} parent=1 // loop_header_branch
      %18 = sbr.rel (%p16) target = $region8
    $region5: #{tpu_custom_call.1} parent=1 // loop_body
      %s20 = ssub.s32 %s15, 1
      %s21 = ssub.s32 %s15, 2
      %s28 = sadd.s32 1, %s23
      %p29 = scmp.ge.s32.totalorder %s28, 2
      %s30 = scalar_select %p29, 0, %s28
      %s31 = sadd.s32 1, %s22
      %s32 = scalar_select %p29, %s31, %s22
      %p33 = scmp.ge.s32.totalorder %s32, 2
      %s34 = scalar_select %p33, 0, %s32
      %s35 = ssub.s32 %s22, %s34
      %s36 = ssub.s32 %s23, %s30
      %s37 = sor.u32 %s35, %s36
      %p38 = scmp.eq.s32.totalorder %s37, 0
      %s40 = sadd.s32 %s39, 1
      %s41 = scalar_select %p38, %s39, %s40
      %p44 = pneg %p38
      %p45 = scmp.eq.s32.totalorder %s15, 3
      %p46 = por %p44, %p45
      %p47 = scmp.ne.s32.totalorder %s39, %s42
      %p48 = scmp.eq.s32.totalorder %s15, 0
      %p49 = por %p47, %p48
      %p50 = scmp.ne.s32.totalorder %s39, %s42
      %p51 = scmp.eq.s32.totalorder %s20, 3
      %p52 = por %p50, %p51
      %p53 = scmp.ne.s32.totalorder %s42, %s43
      %p54 = scmp.eq.s32.totalorder %s20, 0
      %p55 = por %p53, %p54
      %p56 = scmp.ne.s32.totalorder %s42, %s43
      %p57 = scmp.eq.s32.totalorder %s21, 3
      %p58 = por %p56, %p57
      %p60 = scmp.ne.s32.totalorder %s43, %s59
      %p61 = scmp.eq.s32.totalorder %s21, 0
      %p62 = por %p60, %p61
      %s63 = ssub.s32 %s22, %s34
      %s64 = ssub.s32 %s23, %s30
      %s65 = sor.u32 %s63, %s64
      %p66 = scmp.eq.s32.totalorder %s65, 0
      %s68 = sadd.s32 %s67, 1
      %s69 = scalar_select %p66, %s67, %s68
      %p72 = pneg %p66
      %p73 = scmp.eq.s32.totalorder %s15, 3
      %p74 = por %p72, %p73
      %p75 = scmp.ne.s32.totalorder %s67, %s70
      %p76 = scmp.eq.s32.totalorder %s15, 0
      %p77 = por %p75, %p76
      %p78 = scmp.ne.s32.totalorder %s67, %s70
      %p79 = scmp.eq.s32.totalorder %s20, 3
      %p80 = por %p78, %p79
      %p81 = scmp.ne.s32.totalorder %s70, %s71
      %p82 = scmp.eq.s32.totalorder %s20, 0
      %p83 = por %p81, %p82
      %p84 = scmp.ne.s32.totalorder %s70, %s71
      %p85 = scmp.eq.s32.totalorder %s21, 3
      %p86 = por %p84, %p85
      %p88 = scmp.ne.s32.totalorder %s71, %s87
      %p89 = scmp.eq.s32.totalorder %s21, 0
      %p90 = por %p88, %p89
      %s91 = ssub.s32 %s22, %s34
      %p92 = scmp.eq.s32.totalorder %s91, 0
      %s94 = sadd.s32 %s93, 1
      %s95 = scalar_select %p92, %s93, %s94
      %p98 = pneg %p92
      %p99 = scmp.eq.s32.totalorder %s15, 3
      %p100 = por %p98, %p99
      %p101 = scmp.ne.s32.totalorder %s93, %s96
      %p102 = scmp.eq.s32.totalorder %s15, 0
      %p103 = por %p101, %p102
      %p104 = scmp.ne.s32.totalorder %s93, %s96
      %p105 = scmp.eq.s32.totalorder %s20, 3
      %p106 = por %p104, %p105
      %p107 = scmp.ne.s32.totalorder %s96, %s97
      %p108 = scmp.eq.s32.totalorder %s20, 0
      %p109 = por %p107, %p108
      %p110 = scmp.ne.s32.totalorder %s96, %s97
      %p111 = scmp.eq.s32.totalorder %s21, 3
      %p112 = por %p110, %p111
      %p114 = scmp.ne.s32.totalorder %s97, %s113
      %p115 = scmp.eq.s32.totalorder %s21, 0
      %p116 = por %p114, %p115
      %p117 = scmp.le.s32.totalorder 1, %s15
      %p118 = scmp.lt.s32.totalorder %s15, 5
      %p119 = pnand %p117, %p118
      %p120 = pneg %p119
      // Predicated region
      $region9: #{tpu_custom_call.1} parent=5 // pred_check
        _
      $region10: #{tpu_custom_call.1} parent=5 // pred_check_branch
        %122 = sbr.rel (%p119) target = $region12
      $region11: #{tpu_custom_call.1} parent=5 // pred_region
        %s123 = ssub.s32 %s15, 1
      $region12: #{tpu_custom_call.1} parent=5 // pred_fallthru
        _
      %p124 = scmp.lt.s32.totalorder %s15, 4
      // Predicated region
      $region13: #{tpu_custom_call.1} parent=5 // pred_check
        %p125 = pneg %p124
      $region14: #{tpu_custom_call.1} parent=5 // pred_check_branch
        %127 = sbr.rel (%p125) target = $region16
      $region15: #{tpu_custom_call.1} parent=5 // pred_region
        // Predicated region
        $region17: #{tpu_custom_call.1} parent=15 // pred_check
          %p128 = pneg %p49
        $region18: #{tpu_custom_call.1} parent=15 // pred_check_branch
          %130 = sbr.rel (%p128) target = $region20
        $region19: #{tpu_custom_call.1} parent=15 // pred_region
          %s131 = sand.u32 %s39, 1
          %s132 = scalar_lea.sflag [#allocation5], %s131
          %s133 = sand.u32 %s39, 1
          %s134 = smul.addr %s133, 256
          %s135 = scalar_lea.vmem [#allocation4], %s134
          %s136 = smul.u32 16, %s23
          %138 = vsyncadd %s132, 0
          %s139 = smul.addr %s136, 2
          %s140 = smul.addr %s22, 64
          %s141 = sadd.s32 %s139, %s140
          %s142 = smul.addr %s141, 8
          %s143 = scalar_lea.hbm %s0, %s142
          %s144 = sshll.u32 %s143, 4
          %s145 = int_to_ptr.hbm [resolvable:$true] %s144
          %s146 = sshll.u32 %s135, 4
          %s147 = int_to_ptr.vmem [resolvable:$true] %s146
          %152 = dma.hbm_to_vmem [thread:$0]  %s145, 4096, %s147, %s132, 256, 256, 16
        $region20: #{tpu_custom_call.1} parent=15 // pred_fallthru
          _
      $region16: #{tpu_custom_call.1} parent=5 // pred_fallthru
        _
      %p153 = scmp.le.s32.totalorder 1, %s15
      %p154 = scmp.lt.s32.totalorder %s15, 5
      %p155 = pnand %p153, %p154
      %p156 = pneg %p155
      // Predicated region
      $region21: #{tpu_custom_call.1} parent=5 // pred_check
        _
      $region22: #{tpu_custom_call.1} parent=5 // pred_check_branch
        %158 = sbr.rel (%p155) target = $region24
      $region23: #{tpu_custom_call.1} parent=5 // pred_region
        %s159 = ssub.s32 %s15, 1
        %s160 = sand.u32 %s42, 1
        %s161 = scalar_lea.sflag [#allocation5], %s160
        %s162 = sand.u32 %s42, 1
        %s163 = smul.addr %s162, 256
        %s164 = scalar_lea.vmem [#allocation4], %s163
        // Predicated region
        $region25: #{tpu_custom_call.1} parent=23 // pred_check
          %p165 = pneg %p55
        $region26: #{tpu_custom_call.1} parent=23 // pred_check_branch
          %167 = sbr.rel (%p165) target = $region28
        $region27: #{tpu_custom_call.1} parent=23 // pred_region
          %169 = dma.done %s161, 4096
        $region28: #{tpu_custom_call.1} parent=23 // pred_fallthru
          _
        %s170 = sand.u32 %s42, 1
        %s171 = scalar_lea.sflag [#allocation5], %s170
        %s172 = sand.u32 %s42, 1
        %s173 = smul.addr %s172, 256
        %s174 = scalar_lea.vmem [#allocation4], %s173
        %p175 = pneg %p55
        %p176 = pneg %p52
        %p177 = pneg %p83
        %p178 = pneg %p80
        %s179 = smul.u32 16, %s25
        %p180 = scmp.lt.s32.totalorder %s24, 1
        %s181 = scalar_select %p180, %s24, 1
        %p182 = scmp.lt.s32.totalorder %s179, 31
        %s183 = scalar_select %p182, %s179, 31
        %s184 = smul.addr %s181, 32
        %s185 = sadd.s32 %s183, %s184
        %s186 = smul.addr %s185, 8
        %s187 = scalar_lea.vmem %s1, %s186
        %p188 = pneg %p109
        %p189 = pneg %p106
        %s190 = sand.u32 %s96, 1
        %s191 = scalar_lea.sflag [#allocation6], %s190
        %s192 = sand.u32 %s96, 1
        %s193 = smul.addr %s192, 2
        %s194 = scalar_lea.vmem [#allocation7], %s193
        %s195 = smul.u32 16, %s25
        %s196 = smul.u32 16, %s25
        %p197 = scmp.lt.s32.totalorder %s24, 1
        %s198 = scalar_select %p197, %s24, 1
        %p199 = scmp.lt.s32.totalorder %s196, 31
        %s200 = scalar_select %p199, %s196, 31
        %s201 = smul.addr %s198, 32
        %s202 = sadd.s32 %s200, %s201
        %s203 = smul.addr %s202, 8
        %s204 = scalar_lea.vmem %s1, %s203
        %s205 = smul.u32 16, %s25
        %p206 = scmp.eq.s32.totalorder %s25, 0
        // Predicated region
        $region29: #{tpu_custom_call.1} parent=23 // pred_check
          %p207 = pneg %p206
        $region30: #{tpu_custom_call.1} parent=23 // pred_check_branch
          %209 = sbr.rel (%p207) target = $region32
        $region31: #{tpu_custom_call.1} parent=23 // pred_region
          %vm210 = vcmask 0
          %211 = vst.msk [vmem:[#allocation2] sm:$0x1] %vm210, -inf
          %v212 = vlaneseq
          %vm213 = vcmp.ge.s32.totalorder %v212, 0
          %vm214 = vcmp.lt.s32.totalorder %v212, 256
          %vm215 = vmand %vm213, %vm214
          %216 = vst.msk [vmem:[#allocation3] sm:$0x3] %vm215, 0.0
        $region32: #{tpu_custom_call.1} parent=23 // pred_fallthru
          _
        %v217 = vld [vmem:[%s164] sm:$0xff]
        %v218 = vld [vmem:[%s164 + $0x8] sm:$0xff]
        %v219 = vld [vmem:[%s164 + $0x10] sm:$0xff]
        %v220 = vld [vmem:[%s164 + $0x18] sm:$0xff]
        %v221 = vld [vmem:[%s164 + $0x20] sm:$0xff]
        %v222 = vld [vmem:[%s164 + $0x28] sm:$0xff]
        %v223 = vld [vmem:[%s164 + $0x30] sm:$0xff]
        %v224 = vld [vmem:[%s164 + $0x38] sm:$0xff]
        %v225 = vld [vmem:[%s164 + $0x40] sm:$0xff]
        %v226 = vld [vmem:[%s164 + $0x48] sm:$0xff]
        %v227 = vld [vmem:[%s164 + $0x50] sm:$0xff]
        %v228 = vld [vmem:[%s164 + $0x58] sm:$0xff]
        %v229 = vld [vmem:[%s164 + $0x60] sm:$0xff]
        %v230 = vld [vmem:[%s164 + $0x68] sm:$0xff]
        %v231 = vld [vmem:[%s164 + $0x70] sm:$0xff]
        %v232 = vld [vmem:[%s164 + $0x78] sm:$0xff]
        %v233 = vld [vmem:[%s164 + $0x80] sm:$0xff]
        %v234 = vld [vmem:[%s164 + $0x88] sm:$0xff]
        %v235 = vld [vmem:[%s164 + $0x90] sm:$0xff]
        %v236 = vld [vmem:[%s164 + $0x98] sm:$0xff]
        %v237 = vld [vmem:[%s164 + $0xa0] sm:$0xff]
        %v238 = vld [vmem:[%s164 + $0xa8] sm:$0xff]
        %v239 = vld [vmem:[%s164 + $0xb0] sm:$0xff]
        %v240 = vld [vmem:[%s164 + $0xb8] sm:$0xff]
        %v241 = vld [vmem:[%s164 + $0xc0] sm:$0xff]
        %v242 = vld [vmem:[%s164 + $0xc8] sm:$0xff]
        %v243 = vld [vmem:[%s164 + $0xd0] sm:$0xff]
        %v244 = vld [vmem:[%s164 + $0xd8] sm:$0xff]
        %v245 = vld [vmem:[%s164 + $0xe0] sm:$0xff]
        %v246 = vld [vmem:[%s164 + $0xe8] sm:$0xff]
        %v247 = vld [vmem:[%s164 + $0xf0] sm:$0xff]
        %v248 = vld [vmem:[%s164 + $0xf8] sm:$0xff]
        %v249 = vmul.f32 %v217, 10.0
        %v250 = vmul.f32 %v218, 10.0
        %v251 = vmul.f32 %v219, 10.0
        %v252 = vmul.f32 %v220, 10.0
        %v253 = vmul.f32 %v221, 10.0
        %v254 = vmul.f32 %v222, 10.0
        %v255 = vmul.f32 %v223, 10.0
        %v256 = vmul.f32 %v224, 10.0
        %v257 = vmul.f32 %v225, 10.0
        %v258 = vmul.f32 %v226, 10.0
        %v259 = vmul.f32 %v227, 10.0
        %v260 = vmul.f32 %v228, 10.0
        %v261 = vmul.f32 %v229, 10.0
        %v262 = vmul.f32 %v230, 10.0
        %v263 = vmul.f32 %v231, 10.0
        %v264 = vmul.f32 %v232, 10.0
        %v265 = vmul.f32 %v233, 10.0
        %v266 = vmul.f32 %v234, 10.0
        %v267 = vmul.f32 %v235, 10.0
        %v268 = vmul.f32 %v236, 10.0
        %v269 = vmul.f32 %v237, 10.0
        %v270 = vmul.f32 %v238, 10.0
        %v271 = vmul.f32 %v239, 10.0
        %v272 = vmul.f32 %v240, 10.0
        %v273 = vmul.f32 %v241, 10.0
        %v274 = vmul.f32 %v242, 10.0
        %v275 = vmul.f32 %v243, 10.0
        %v276 = vmul.f32 %v244, 10.0
        %v277 = vmul.f32 %v245, 10.0
        %v278 = vmul.f32 %v246, 10.0
        %v279 = vmul.f32 %v247, 10.0
        %v280 = vmul.f32 %v248, 10.0
        %v281 = vmax.f32 %v249, %v250
        %282 = vmax.xlane.f32.xlu0 %v281
        %v283 = vpop.xlane.xlu0 %282
        %v284 = vmax.f32 %v251, %v252
        %285 = vmax.xlane.f32.xlu0 %v284
        %v286 = vpop.xlane.xlu0 %285
        %v287 = vmax.f32 %v253, %v254
        %288 = vmax.xlane.f32.xlu0 %v287
        %v289 = vpop.xlane.xlu0 %288
        %v290 = vmax.f32 %v255, %v256
        %291 = vmax.xlane.f32.xlu0 %v290
        %v292 = vpop.xlane.xlu0 %291
        %v293 = vmax.f32 %v257, %v258
        %294 = vmax.xlane.f32.xlu0 %v293
        %v295 = vpop.xlane.xlu0 %294
        %v296 = vmax.f32 %v259, %v260
        %297 = vmax.xlane.f32.xlu0 %v296
        %v298 = vpop.xlane.xlu0 %297
        %v299 = vmax.f32 %v261, %v262
        %300 = vmax.xlane.f32.xlu0 %v299
        %v301 = vpop.xlane.xlu0 %300
        %v302 = vmax.f32 %v263, %v264
        %303 = vmax.xlane.f32.xlu0 %v302
        %v304 = vpop.xlane.xlu0 %303
        %v305 = vmax.f32 %v265, %v266
        %306 = vmax.xlane.f32.xlu0 %v305
        %v307 = vpop.xlane.xlu0 %306
        %v308 = vmax.f32 %v267, %v268
        %309 = vmax.xlane.f32.xlu0 %v308
        %v310 = vpop.xlane.xlu0 %309
        %v311 = vmax.f32 %v269, %v270
        %312 = vmax.xlane.f32.xlu0 %v311
        %v313 = vpop.xlane.xlu0 %312
        %v314 = vmax.f32 %v271, %v272
        %315 = vmax.xlane.f32.xlu0 %v314
        %v316 = vpop.xlane.xlu0 %315
        %v317 = vmax.f32 %v273, %v274
        %318 = vmax.xlane.f32.xlu0 %v317
        %v319 = vpop.xlane.xlu0 %318
        %v320 = vmax.f32 %v275, %v276
        %321 = vmax.xlane.f32.xlu0 %v320
        %v322 = vpop.xlane.xlu0 %321
        %v323 = vmax.f32 %v277, %v278
        %324 = vmax.xlane.f32.xlu0 %v323
        %v325 = vpop.xlane.xlu0 %324
        %v326 = vmax.f32 %v279, %v280
        %327 = vmax.xlane.f32.xlu0 %v326
        %v328 = vpop.xlane.xlu0 %327
        %v329 = vmax.f32 %v283, %v295
        %v330 = vmax.f32 %v286, %v298
        %v331 = vmax.f32 %v289, %v301
        %v332 = vmax.f32 %v292, %v304
        %v333 = vmax.f32 %v329, %v307
        %v334 = vmax.f32 %v330, %v310
        %v335 = vmax.f32 %v331, %v313
        %v336 = vmax.f32 %v332, %v316
        %v337 = vmax.f32 %v333, %v319
        %v338 = vmax.f32 %v334, %v322
        %v339 = vmax.f32 %v335, %v325
        %v340 = vmax.f32 %v336, %v328
        %v341 = vmax.f32 %v337, %v338
        %v342 = vmax.f32 %v339, %v340
        %v343 = vmax.f32 %v341, %v342
        %v344 = vrot.slane %v343, 4
        %v345 = vmax.f32 %v343, %v344
        %v346 = vrot.slane %v345, 2
        %v347 = vmax.f32 %v345, %v346
        %v348 = vrot.slane %v347, 1
        %v349 = vmax.f32 %v347, %v348
        %v350 = vsub.f32 %v249, %v349
        %v351 = vsub.f32 %v250, %v349
        %v352 = vsub.f32 %v251, %v349
        %v353 = vsub.f32 %v252, %v349
        %v354 = vsub.f32 %v253, %v349
        %v355 = vsub.f32 %v254, %v349
        %v356 = vsub.f32 %v255, %v349
        %v357 = vsub.f32 %v256, %v349
        %v358 = vsub.f32 %v257, %v349
        %v359 = vsub.f32 %v258, %v349
        %v360 = vsub.f32 %v259, %v349
        %v361 = vsub.f32 %v260, %v349
        %v362 = vsub.f32 %v261, %v349
        %v363 = vsub.f32 %v262, %v349
        %v364 = vsub.f32 %v263, %v349
        %v365 = vsub.f32 %v264, %v349
        %v366 = vsub.f32 %v265, %v349
        %v367 = vsub.f32 %v266, %v349
        %v368 = vsub.f32 %v267, %v349
        %v369 = vsub.f32 %v268, %v349
        %v370 = vsub.f32 %v269, %v349
        %v371 = vsub.f32 %v270, %v349
        %v372 = vsub.f32 %v271, %v349
        %v373 = vsub.f32 %v272, %v349
        %v374 = vsub.f32 %v273, %v349
        %v375 = vsub.f32 %v274, %v349
        %v376 = vsub.f32 %v275, %v349
        %v377 = vsub.f32 %v276, %v349
        %v378 = vsub.f32 %v277, %v349
        %v379 = vsub.f32 %v278, %v349
        %v380 = vsub.f32 %v279, %v349
        %v381 = vsub.f32 %v280, %v349
        %v382 = vmul.f32 %v350, 1.442695
        %v383 = vpow.pop %v382
        %v384 = vmul.f32 %v351, 1.442695
        %v385 = vpow.pop %v384
        %v386 = vmul.f32 %v352, 1.442695
        %v387 = vpow.pop %v386
        %v388 = vmul.f32 %v353, 1.442695
        %v389 = vpow.pop %v388
        %v390 = vmul.f32 %v354, 1.442695
        %v391 = vpow.pop %v390
        %v392 = vmul.f32 %v355, 1.442695
        %v393 = vpow.pop %v392
        %v394 = vmul.f32 %v356, 1.442695
        %v395 = vpow.pop %v394
        %v396 = vmul.f32 %v357, 1.442695
        %v397 = vpow.pop %v396
        %v398 = vmul.f32 %v358, 1.442695
        %v399 = vpow.pop %v398
        %v400 = vmul.f32 %v359, 1.442695
        %v401 = vpow.pop %v400
        %v402 = vmul.f32 %v360, 1.442695
        %v403 = vpow.pop %v402
        %v404 = vmul.f32 %v361, 1.442695
        %v405 = vpow.pop %v404
        %v406 = vmul.f32 %v362, 1.442695
        %v407 = vpow.pop %v406
        %v408 = vmul.f32 %v363, 1.442695
        %v409 = vpow.pop %v408
        %v410 = vmul.f32 %v364, 1.442695
        %v411 = vpow.pop %v410
        %v412 = vmul.f32 %v365, 1.442695
        %v413 = vpow.pop %v412
        %v414 = vmul.f32 %v366, 1.442695
        %v415 = vpow.pop %v414
        %v416 = vmul.f32 %v367, 1.442695
        %v417 = vpow.pop %v416
        %v418 = vmul.f32 %v368, 1.442695
        %v419 = vpow.pop %v418
        %v420 = vmul.f32 %v369, 1.442695
        %v421 = vpow.pop %v420
        %v422 = vmul.f32 %v370, 1.442695
        %v423 = vpow.pop %v422
        %v424 = vmul.f32 %v371, 1.442695
        %v425 = vpow.pop %v424
        %v426 = vmul.f32 %v372, 1.442695
        %v427 = vpow.pop %v426
        %v428 = vmul.f32 %v373, 1.442695
        %v429 = vpow.pop %v428
        %v430 = vmul.f32 %v374, 1.442695
        %v431 = vpow.pop %v430
        %v432 = vmul.f32 %v375, 1.442695
        %v433 = vpow.pop %v432
        %v434 = vmul.f32 %v376, 1.442695
        %v435 = vpow.pop %v434
        %v436 = vmul.f32 %v377, 1.442695
        %v437 = vpow.pop %v436
        %v438 = vmul.f32 %v378, 1.442695
        %v439 = vpow.pop %v438
        %v440 = vmul.f32 %v379, 1.442695
        %v441 = vpow.pop %v440
        %v442 = vmul.f32 %v380, 1.442695
        %v443 = vpow.pop %v442
        %v444 = vmul.f32 %v381, 1.442695
        %v445 = vpow.pop %v444
        %v446 = vadd.f32 %v383, %v385
        %447 = vadd.xlane.f32.xlu0 %v446
        %v448 = vpop.xlane.xlu0 %447
        %v449 = vadd.f32 %v387, %v389
        %450 = vadd.xlane.f32.xlu0 %v449
        %v451 = vpop.xlane.xlu0 %450
        %v452 = vadd.f32 %v391, %v393
        %453 = vadd.xlane.f32.xlu0 %v452
        %v454 = vpop.xlane.xlu0 %453
        %v455 = vadd.f32 %v395, %v397
        %456 = vadd.xlane.f32.xlu0 %v455
        %v457 = vpop.xlane.xlu0 %456
        %v458 = vadd.f32 %v399, %v401
        %459 = vadd.xlane.f32.xlu0 %v458
        %v460 = vpop.xlane.xlu0 %459
        %v461 = vadd.f32 %v403, %v405
        %462 = vadd.xlane.f32.xlu0 %v461
        %v463 = vpop.xlane.xlu0 %462
        %v464 = vadd.f32 %v407, %v409
        %465 = vadd.xlane.f32.xlu0 %v464
        %v466 = vpop.xlane.xlu0 %465
        %v467 = vadd.f32 %v411, %v413
        %468 = vadd.xlane.f32.xlu0 %v467
        %v469 = vpop.xlane.xlu0 %468
        %v470 = vadd.f32 %v415, %v417
        %471 = vadd.xlane.f32.xlu0 %v470
        %v472 = vpop.xlane.xlu0 %471
        %v473 = vadd.f32 %v419, %v421
        %474 = vadd.xlane.f32.xlu0 %v473
        %v475 = vpop.xlane.xlu0 %474
        %v476 = vadd.f32 %v423, %v425
        %477 = vadd.xlane.f32.xlu0 %v476
        %v478 = vpop.xlane.xlu0 %477
        %v479 = vadd.f32 %v427, %v429
        %480 = vadd.xlane.f32.xlu0 %v479
        %v481 = vpop.xlane.xlu0 %480
        %v482 = vadd.f32 %v431, %v433
        %483 = vadd.xlane.f32.xlu0 %v482
        %v484 = vpop.xlane.xlu0 %483
        %v485 = vadd.f32 %v435, %v437
        %486 = vadd.xlane.f32.xlu0 %v485
        %v487 = vpop.xlane.xlu0 %486
        %v488 = vadd.f32 %v439, %v441
        %489 = vadd.xlane.f32.xlu0 %v488
        %v490 = vpop.xlane.xlu0 %489
        %v491 = vadd.f32 %v443, %v445
        %492 = vadd.xlane.f32.xlu0 %v491
        %v493 = vpop.xlane.xlu0 %492
        %v494 = vlog2.pop %v448
        %v495 = vmul.f32 %v494, 0.6931472
        %v496 = vlog2.pop %v451
        %v497 = vmul.f32 %v496, 0.6931472
        %v498 = vlog2.pop %v454
        %v499 = vmul.f32 %v498, 0.6931472
        %v500 = vlog2.pop %v457
        %v501 = vmul.f32 %v500, 0.6931472
        %v502 = vlog2.pop %v460
        %v503 = vmul.f32 %v502, 0.6931472
        %v504 = vlog2.pop %v463
        %v505 = vmul.f32 %v504, 0.6931472
        %v506 = vlog2.pop %v466
        %v507 = vmul.f32 %v506, 0.6931472
        %v508 = vlog2.pop %v469
        %v509 = vmul.f32 %v508, 0.6931472
        %v510 = vlog2.pop %v472
        %v511 = vmul.f32 %v510, 0.6931472
        %v512 = vlog2.pop %v475
        %v513 = vmul.f32 %v512, 0.6931472
        %v514 = vlog2.pop %v478
        %v515 = vmul.f32 %v514, 0.6931472
        %v516 = vlog2.pop %v481
        %v517 = vmul.f32 %v516, 0.6931472
        %v518 = vlog2.pop %v484
        %v519 = vmul.f32 %v518, 0.6931472
        %v520 = vlog2.pop %v487
        %v521 = vmul.f32 %v520, 0.6931472
        %v522 = vlog2.pop %v490
        %v523 = vmul.f32 %v522, 0.6931472
        %v524 = vlog2.pop %v493
        %v525 = vmul.f32 %v524, 0.6931472
        %v526 = vadd.f32 %v349, %v495
        %v527 = vadd.f32 %v349, %v497
        %v528 = vadd.f32 %v349, %v499
        %v529 = vadd.f32 %v349, %v501
        %v530 = vadd.f32 %v349, %v503
        %v531 = vadd.f32 %v349, %v505
        %v532 = vadd.f32 %v349, %v507
        %v533 = vadd.f32 %v349, %v509
        %v534 = vadd.f32 %v349, %v511
        %v535 = vadd.f32 %v349, %v513
        %v536 = vadd.f32 %v349, %v515
        %v537 = vadd.f32 %v349, %v517
        %v538 = vadd.f32 %v349, %v519
        %v539 = vadd.f32 %v349, %v521
        %v540 = vadd.f32 %v349, %v523
        %v541 = vadd.f32 %v349, %v525
        %vm542 = vcmask 7168
        %543 = vst.msk [vmem:[%s204] sm:$0xff] %vm542, %v526
        %544 = vst.msk [vmem:[%s204 + $0x8] sm:$0xff] %vm542, %v527
        %545 = vst.msk [vmem:[%s204 + $0x10] sm:$0xff] %vm542, %v528
        %546 = vst.msk [vmem:[%s204 + $0x18] sm:$0xff] %vm542, %v529
        %547 = vst.msk [vmem:[%s204 + $0x20] sm:$0xff] %vm542, %v530
        %548 = vst.msk [vmem:[%s204 + $0x28] sm:$0xff] %vm542, %v531
        %549 = vst.msk [vmem:[%s204 + $0x30] sm:$0xff] %vm542, %v532
        %550 = vst.msk [vmem:[%s204 + $0x38] sm:$0xff] %vm542, %v533
        %551 = vst.msk [vmem:[%s204 + $0x40] sm:$0xff] %vm542, %v534
        %552 = vst.msk [vmem:[%s204 + $0x48] sm:$0xff] %vm542, %v535
        %553 = vst.msk [vmem:[%s204 + $0x50] sm:$0xff] %vm542, %v536
        %554 = vst.msk [vmem:[%s204 + $0x58] sm:$0xff] %vm542, %v537
        %555 = vst.msk [vmem:[%s204 + $0x60] sm:$0xff] %vm542, %v538
        %556 = vst.msk [vmem:[%s204 + $0x68] sm:$0xff] %vm542, %v539
        %557 = vst.msk [vmem:[%s204 + $0x70] sm:$0xff] %vm542, %v540
        %558 = vst.msk [vmem:[%s204 + $0x78] sm:$0xff] %vm542, %v541
        %559 = vmatpush.msra.mxu0 %v443
        %560 = vmatpush.msra.mxu0 %v439
        %561 = vmatpush.msra.mxu0 %v435
        %562 = vmatpush.msra.mxu0 %v431
        %563 = vmatpush.msra.mxu0 %v427
        %564 = vmatpush.msra.mxu0 %v423
        %565 = vmatpush.msra.mxu0 %v419
        %566 = vmatpush.msra.mxu0 %v415
        %567 = vmatpush.msra.mxu0 %v411
        %568 = vmatpush.msra.mxu0 %v407
        %569 = vmatpush.msra.mxu0 %v403
        %570 = vmatpush.msra.mxu0 %v399
        %571 = vmatpush.msra.mxu0 %v395
        %572 = vmatpush.msra.mxu0 %v391
        %573 = vmatpush.msra.mxu0 %v387
        %574 = vmatpush.msra.mxu0 %v383
        %575 = vmatmul.f32.gmra.mxu0 1.0
        %v576 = vpop.f32.mrf.mxu0
        %v577 = vadd.f32 0.0, %v576
        %578 = vdwg.mxu0
        %579 = vmatpush.msra.mxu0 %v445
        %580 = vmatpush.msra.mxu0 %v441
        %581 = vmatpush.msra.mxu0 %v437
        %582 = vmatpush.msra.mxu0 %v433
        %583 = vmatpush.msra.mxu0 %v429
        %584 = vmatpush.msra.mxu0 %v425
        %585 = vmatpush.msra.mxu0 %v421
        %586 = vmatpush.msra.mxu0 %v417
        %587 = vmatpush.msra.mxu0 %v413
        %588 = vmatpush.msra.mxu0 %v409
        %589 = vmatpush.msra.mxu0 %v405
        %590 = vmatpush.msra.mxu0 %v401
        %591 = vmatpush.msra.mxu0 %v397
        %592 = vmatpush.msra.mxu0 %v393
        %593 = vmatpush.msra.mxu0 %v389
        %594 = vmatpush.msra.mxu0 %v385
        %595 = vmatmul.f32.gmra.mxu0 1.0
        %v596 = vpop.f32.mrf.mxu0
        %v597 = vadd.f32 0.0, %v596
        %598 = vdwg.mxu0
        %v599 = vld [vmem:[#allocation2] sm:$0x1]
        %v600 = vmax.f32 %v599, %v349
        %v601 = vld [vmem:[#allocation3] sm:$0x3]
        %v602 = vsub.f32 %v599, %v600
        %v603 = vmul.f32 %v602, 1.442695
        %v604 = vpow.pop %v603
        %606 = vset.pattern.permute.xlu0 0
        %607 = vperm.xlu0 %606, %v604
        %v608 = vpop.permute.xlu0 %607
        %v610 = vperm.slane %v608, 0
        %v611 = vmul.f32 %v601, %v610
        %v612 = vsub.f32 %v349, %v600
        %v613 = vmul.f32 %v612, 1.442695
        %v614 = vpow.pop %v613
        %616 = vset.pattern.permute.xlu0 0
        %617 = vperm.xlu0 %616, %v614
        %v618 = vpop.permute.xlu0 %617
        %v620 = vperm.slane %v618, 0
        %v621 = vmul.f32 %v577, %v620
        %v622 = vmul.f32 %v597, %v620
        %v625 = vrot.slane %v622, 7
        %vm626 = vcmask 1040384
        %v627 = vsel %vm626, %v621, %v625
        %v629 = vadd.f32 %v611, %v627
        %v630 = vlaneseq
        %vm631 = vcmp.ge.s32.totalorder %v630, 0
        %vm632 = vcmp.lt.s32.totalorder %v630, 256
        %vm633 = vmand %vm631, %vm632
        %634 = vst.msk [vmem:[#allocation3] sm:$0x3] %vm633, %v629
        %vm635 = vcmask 0
        %636 = vst.msk [vmem:[#allocation2] sm:$0x1] %vm635, %v600
        %p637 = scmp.eq.s32.totalorder %s25, 1
        // Predicated region
        $region33: #{tpu_custom_call.1} parent=23 // pred_check
          %p638 = pneg %p637
        $region34: #{tpu_custom_call.1} parent=23 // pred_check_branch
          %640 = sbr.rel (%p638) target = $region36
        $region35: #{tpu_custom_call.1} parent=23 // pred_region
          %v641 = vld [vmem:[#allocation2] sm:$0x1]
          %v642 = vld [vmem:[#allocation3] sm:$0x3]
          %v643 = vlog2.pop %v642
          %v644 = vmul.f32 %v643, 0.6931472
          %646 = vset.pattern.permute.xlu0 0
          %647 = vperm.xlu0 %646, %v641
          %v648 = vpop.permute.xlu0 %647
          %v650 = vperm.slane %v648, 0
          %v651 = vadd.f32 %v650, %v644
          %652 = vst.msk [vmem:[%s194] sm:$0x3] %vm633, %v651
        $region36: #{tpu_custom_call.1} parent=23 // pred_fallthru
          _
        %s653 = smul.u32 16, %s25
        %p654 = scmp.lt.s32.totalorder %s24, 1
        %s655 = scalar_select %p654, %s24, 1
        %p656 = scmp.lt.s32.totalorder %s653, 31
        %s657 = scalar_select %p656, %s653, 31
        %s658 = smul.addr %s655, 32
        %s659 = sadd.s32 %s657, %s658
        %s660 = smul.addr %s659, 8
        %s661 = scalar_lea.vmem %s1, %s660
        %s662 = sand.u32 %s96, 1
        %s663 = scalar_lea.sflag [#allocation6], %s662
        %s664 = sand.u32 %s96, 1
        %s665 = smul.addr %s664, 2
        %s666 = scalar_lea.vmem [#allocation7], %s665
        // Predicated region
        $region37: #{tpu_custom_call.1} parent=23 // pred_check
          %p667 = pneg %p80
        $region38: #{tpu_custom_call.1} parent=23 // pred_check_branch
          %669 = sbr.rel (%p667) target = $region40
        $region39: #{tpu_custom_call.1} parent=23 // pred_region
          %s670 = smul.u32 16, %s25
        $region40: #{tpu_custom_call.1} parent=23 // pred_fallthru
          _
        // Predicated region
        $region41: #{tpu_custom_call.1} parent=23 // pred_check
          %p671 = pneg %p106
        $region42: #{tpu_custom_call.1} parent=23 // pred_check_branch
          %673 = sbr.rel (%p671) target = $region44
        $region43: #{tpu_custom_call.1} parent=23 // pred_region
          %675 = vsyncadd %s663, 0
          %s676 = smul.addr %s24, 2
          %s677 = scalar_lea.hbm %s2, %s676
          %s679 = sshll.u32 %s666, 4
          %s680 = int_to_ptr.vmem [resolvable:$true] %s679
          %s681 = sshll.u32 %s677, 4
          %s682 = int_to_ptr.hbm [resolvable:$true] %s681
          %684 = dma.vmem_to_hbm [thread:$0]  %s680, 32, %s682, %s663
        $region44: #{tpu_custom_call.1} parent=23 // pred_fallthru
          _
      $region24: #{tpu_custom_call.1} parent=5 // pred_fallthru
        _
      %p685 = scmp.le.s32.totalorder 2, %s15
      // Predicated region
      $region45: #{tpu_custom_call.1} parent=5 // pred_check
        %p686 = pneg %p685
      $region46: #{tpu_custom_call.1} parent=5 // pred_check_branch
        %688 = sbr.rel (%p686) target = $region48
      $region47: #{tpu_custom_call.1} parent=5 // pred_region
        %s689 = ssub.s32 %s15, 2
        // Predicated region
        $region49: #{tpu_custom_call.1} parent=47 // pred_check
          %p690 = pneg %p86
        $region50: #{tpu_custom_call.1} parent=47 // pred_check_branch
          %692 = sbr.rel (%p690) target = $region52
        $region51: #{tpu_custom_call.1} parent=47 // pred_region
          %s693 = smul.u32 16, %s27
          %p694 = scmp.lt.s32.totalorder %s26, 1
          %s695 = scalar_select %p694, %s26, 1
          %p696 = scmp.lt.s32.totalorder %s693, 31
          %s697 = scalar_select %p696, %s693, 31
          %s698 = smul.addr %s695, 32
          %s699 = sadd.s32 %s697, %s698
          %s700 = smul.addr %s699, 8
          %s701 = scalar_lea.vmem %s1, %s700
        $region52: #{tpu_custom_call.1} parent=47 // pred_fallthru
          _
        // Predicated region
        $region53: #{tpu_custom_call.1} parent=47 // pred_check
          %p702 = pneg %p112
        $region54: #{tpu_custom_call.1} parent=47 // pred_check_branch
          %704 = sbr.rel (%p702) target = $region56
        $region55: #{tpu_custom_call.1} parent=47 // pred_region
          %s705 = sand.u32 %s97, 1
          %s706 = scalar_lea.sflag [#allocation6], %s705
          %s707 = sand.u32 %s97, 1
          %s708 = smul.addr %s707, 2
          %s709 = scalar_lea.vmem [#allocation7], %s708
          %711 = dma.done %s706, 32
        $region56: #{tpu_custom_call.1} parent=47 // pred_fallthru
          _
      $region48: #{tpu_custom_call.1} parent=5 // pred_fallthru
        _
    $region6: #{tpu_custom_call.1} parent=1 // loop_footer
      %s19 = sadd.s32 1, %s15
    $region7: #{tpu_custom_call.1} parent=1 // loop_footer_branch
      %14 = sbr.rel target = $region3
    $region8: #{tpu_custom_call.1} parent=1 // loop_exit
      _
    %712 = vsyncpa [#allocation5], 1
    %s713 = scalar_lea.sflag [#allocation5], 1
    %714 = vsyncpa %s713, 1
    %715 = vsyncpa [#allocation6], 1
    %s716 = scalar_lea.sflag [#allocation6], 1
    %717 = vsyncpa %s716, 1

</llo_original>
